<compile_context>
chip_gen: v6e
topology: v6e:2x2x1
jax: 0.10.0
libtpu: 0.0.40
codegen_flags: <defaults>
</compile_context>

<pallas_src>
import numpy as np
import jax
import jax.numpy as jnp
from jax import lax
from jax.experimental import pallas as pl
from jax.experimental.pallas import tpu as pltpu


# ----------------------------- wrapper-side helpers -----------------------------
def _make_masks_np(B, H, W, kh, kw):
    """Validity mask per conv tap at every flattened output position (kh*kw, B*H*W)."""
    ph, pw = kh // 2, kw // 2
    ii = np.arange(H)[:, None]
    jj = np.arange(W)[None, :]
    rows = []
    for ki in range(kh):
        for kj in range(kw):
            v = ((ii + ki - ph >= 0) & (ii + ki - ph < H) &
                 (jj + kj - pw >= 0) & (jj + kj - pw < W)).astype(np.float32)
            rows.append(np.tile(v.reshape(-1), B))            # (B*H*W,)
    return np.stack(rows, axis=0)                             # (kh*kw, B*H*W)


def _im2col_patches(x_btchw, kh, kw):
    """(B,T,C,H,W) -> (T, kh*kw*C + 1, B*H*W); trailing ones row folds the bias."""
    B, T, C, H, W = x_btchw.shape
    ph, pw = kh // 2, kw // 2
    xp = jnp.pad(x_btchw, ((0, 0), (0, 0), (0, 0), (ph, ph), (pw, pw)))
    taps = []
    for ki in range(kh):
        for kj in range(kw):
            taps.append(xp[:, :, :, ki:ki + H, kj:kj + W])     # (B,T,C,H,W)
    p = jnp.stack(taps, axis=2)                                # (B,T,K,C,H,W)
    p = jnp.transpose(p, (1, 2, 3, 0, 4, 5))                   # (T,K,C,B,H,W)
    p = p.reshape(T, kh * kw * C, B * H * W)
    ones = jnp.ones((T, 1, B * H * W), p.dtype)
    return jnp.concatenate([p, ones], axis=1)                  # (T, kh*kw*C+1, BHW)


def _flatten_conv_w(w):
    """(Cout, Cin, kh, kw) -> (Cout, kh*kw*Cin) with column index k*Cin + c, k=ki*kw+kj."""
    Cout, Cin, kh, kw = w.shape
    return jnp.transpose(w, (0, 2, 3, 1)).reshape(Cout, kh * kw * Cin)


# --------------------------------- Pallas kernel ---------------------------------
def make_layer_call(B, T, H, W, Cin, Cout, kh, kw, dtype=jnp.float32):
    """One RNN_Conv_Cell layer over the full sequence (time is the grid axis)."""
    ph, pw = kh // 2, kw // 2
    BHW = B * H * W
    K1 = kh * kw * Cin + 1          # im2col rows for x (+1 ones row folding the biases)
    KC = kh * kw * Cout             # im2col rows for the recurrent state
    PAD = ph * W + pw               # max |flat spatial offset| of a tap
    EXT = BHW + 2 * PAD             # patch-scratch lane extent (zero borders, no wrap)
    offs = [(ki - ph) * W + (kj - pw) for ki in range(kh) for kj in range(kw)]

    def kernel(x_ref, wx_ref, wc_ref, mask_ref, h_ref, c_ref, cpatch):
        t = pl.program_id(0)

        # zero the patch-form recurrent state (incl. borders) once at t == 0
        @pl.when(t == 0)
        def _():
            cpatch[...] = jnp.zeros_like(cpatch)

        # ---- x path: single fused matmul for spatial conv + temporal(x) conv + bias
        acc_x = jnp.dot(wx_ref[...], x_ref[...],
                        preferred_element_type=jnp.float32)          # (2*Cout, BHW)

        # ---- c path: recurrent state already lives in shifted (im2col) patch form
        patch = cpatch[:, PAD:PAD + BHW] * mask_ref[...]              # (KC, BHW)
        acc_c = jnp.dot(wc_ref[...], patch,
                        preferred_element_type=jnp.float32)           # (Cout, BHW)

        spatial_out = jnp.tanh(acc_x[:Cout])
        temporal_out = jax.nn.sigmoid(acc_x[Cout:] + acc_c)
        h_ref[...] = (spatial_out * temporal_out).astype(h_ref.dtype)

        # scatter the new gate state into patch form (one shifted copy per tap);
        # borders stay zero, so the next step's read never sees wraparound garbage.
        for k, off in enumerate(offs):
            cpatch[k * Cout:(k + 1) * Cout, PAD - off:PAD - off + BHW] = temporal_out

        # final recurrent state: write only once, on the last timestep
        @pl.when(t == pl.num_programs(0) - 1)
        def _():
            c_ref[...] = temporal_out.astype(c_ref.dtype)

    grid_spec = pltpu.PrefetchScalarGridSpec(
        num_scalar_prefetch=0,
        grid=(T,),
        in_specs=[
            pl.BlockSpec((pl.Squeezed(), K1, BHW), lambda t: (t, 0, 0)),  # x patches
            pl.BlockSpec((2 * Cout, K1), lambda t: (0, 0)),               # fused x-weights
            pl.BlockSpec((Cout, KC), lambda t: (0, 0)),                   # c-weights
            pl.BlockSpec((KC, BHW), lambda t: (0, 0)),                    # tap masks
        ],
        out_specs=[
            pl.BlockSpec((pl.Squeezed(), Cout, BHW), lambda t: (t, 0, 0)),  # h sequence
            pl.BlockSpec((Cout, BHW), lambda t: (0, 0)),                    # final c
        ],
        scratch_shapes=[pltpu.VMEM((KC, EXT), jnp.float32)],
    )

    return pl.pallas_call(
        kernel,
        grid_spec=grid_spec,
        out_shape=(
            jax.ShapeDtypeStruct((T, Cout, BHW), dtype),
            jax.ShapeDtypeStruct((Cout, BHW), dtype),
        ),
        compiler_params=pltpu.CompilerParams(
            dimension_semantics=("arbitrary",)),   # time is a true recurrence
    )


def rnn_conv_forward(x, params):
    """Forward pass of RNN_Conv (batch_first semantics, return_all_layers=False).

    x: (B, T, C, H, W) float32.  params: list per layer of
    (w_spatial (Cout,Cin,kh,kw), b_spatial (Cout,),
     w_temporal (Cout,Cout+Cin,kh,kw), b_temporal (Cout,)).
    Returns ([last_layer_output (B,T,Cout,H,W)], [last_c (B,Cout,H,W)]).
    """
    # TODO(synk): p_TD / .detach() in the reference only alters autograd, not forward
    # values, so it is intentionally a no-op here.
    B, T, _, H, W = x.shape
    cur = x
    last_c = None
    for (ws, bs, wt, bt) in params:
        Cout, Cin, kh, kw = ws.shape
        assert wt.shape[1] == Cout + Cin
        assert Cin == Cout, "RNN_Conv_Cell requires hidden_dim == input_dim (cat of c and x)"
        BHW = B * H * W

        x_patch = _im2col_patches(cur, kh, kw)                       # (T, 9*Cin+1, BHW)
        ws_flat = _flatten_conv_w(ws)                                # (Cout, 9*Cin)
        wtc_flat = _flatten_conv_w(wt[:, :Cout])                     # (Cout, 9*Cout)
        wtx_flat = _flatten_conv_w(wt[:, Cout:])                     # (Cout, 9*Cin)
        bias_col = jnp.concatenate([bs, bt])[:, None]                # (2*Cout, 1)
        wx_full = jnp.concatenate(
            [jnp.concatenate([ws_flat, wtx_flat], axis=0), bias_col], axis=1)

        maskall = jnp.asarray(
            np.repeat(_make_masks_np(B, H, W, kh, kw), Cout, axis=0))  # (9*Cout, BHW)

        layer_call = make_layer_call(B, T, H, W, Cin, Cout, kh, kw, dtype=x.dtype)
        h_seq, c_last = layer_call(x_patch, wx_full, wtc_flat, maskall)

        cur = jnp.transpose(h_seq.reshape(T, Cout, B, H, W), (2, 0, 1, 3, 4))  # (B,T,C,H,W)
        last_c = jnp.transpose(c_last.reshape(Cout, B, H, W), (1, 0, 2, 3))    # (B,C,H,W)
    return [cur], [last_c]


# ---------------------------- pure-JAX reference ----------------------------
def _ref_cell(x, c, ws, bs, wt, bt):
    dn = ("NCHW", "OIHW", "NCHW")
    sp = lax.conv_general_dilated(x, ws, (1, 1), "SAME", dimension_numbers=dn)
    sp = sp + bs[None, :, None, None]
    ti = jnp.concatenate([c, x], axis=1)
    tp = lax.conv_general_dilated(ti, wt, (1, 1), "SAME", dimension_numbers=dn)
    tp = tp + bt[None, :, None, None]
    s = jnp.tanh(sp)
    g = jax.nn.sigmoid(tp)
    return s * g, g


def rnn_conv_reference(x, params):
    B, T, _, H, W = x.shape
    cur = x
    last_c = None
    for (ws, bs, wt, bt) in params:
        Cout = ws.shape[0]
        c = jnp.zeros((B, Cout, H, W), x.dtype)
        outs = []
        for t in range(T):
            h, c = _ref_cell(cur[:, t], c, ws, bs, wt, bt)
            outs.append(h)
        cur = jnp.stack(outs, axis=1)
        last_c = c
    return [cur], [last_c]


# --------------------------------- main -------------------------------------
if __name__ == "__main__":
    B, T, C, H, W = 2, 4, 4, 16, 16
    hidden = C            # cell requires hidden_dim == input_dim (see concat of c, x)
    kh = kw = 3
    num_layers = 2

    key = jax.random.PRNGKey(0)
    params = []
    for l in range(num_layers):
        cin = C if l == 0 else hidden
        key, k1, k2, k3, k4 = jax.random.split(key, 5)
        bound_s = 1.0 / np.sqrt(cin * kh * kw)
        bound_t = 1.0 / np.sqrt((cin + hidden) * kh * kw)
        ws = jax.random.uniform(k1, (hidden, cin, kh, kw), jnp.float32, -bound_s, bound_s)
        bs = jax.random.uniform(k2, (hidden,), jnp.float32, -bound_s, bound_s)
        wt = jax.random.uniform(k3, (hidden, hidden + cin, kh, kw), jnp.float32, -bound_t, bound_t)
        bt = jax.random.uniform(k4, (hidden,), jnp.float32, -bound_t, bound_t)
        params.append((ws, bs, wt, bt))

    key, kx = jax.random.split(key)
    x = jax.random.normal(kx, (B, T, C, H, W), jnp.float32)

    (out_list, state_list) = rnn_conv_forward(x, params)
    out = jax.block_until_ready(out_list[0])
    c_last = jax.block_until_ready(state_list[0])

    (ref_out_list, ref_state_list) = rnn_conv_reference(x, params)
    ref_out = jax.block_until_ready(ref_out_list[0])
    ref_c = jax.block_until_ready(ref_state_list[0])

    assert out.shape == (B, T, hidden, H, W)
    assert c_last.shape == (B, hidden, H, W)
    np.testing.assert_allclose(np.asarray(out), np.asarray(ref_out), atol=1e-4, rtol=1e-4)
    np.testing.assert_allclose(np.asarray(c_last), np.asarray(ref_c), atol=1e-4, rtol=1e-4)

    print("KERNEL_OK")
</pallas_src>

<mosaic_0001>
module attributes {stable_mosaic.version = 11 : i64} {
  func.func @kernel(%arg0: i32, %arg1: memref<1x37x512xf32, #tpu.memory_space<vmem>>, %arg2: memref<8x37xf32, #tpu.memory_space<vmem>>, %arg3: memref<4x36xf32, #tpu.memory_space<vmem>>, %arg4: memref<36x512xf32, #tpu.memory_space<vmem>>, %arg5: memref<1x4x512xf32, #tpu.memory_space<vmem>>, %arg6: memref<4x512xf32, #tpu.memory_space<vmem>>, %arg7: memref<36x546xf32, #tpu.memory_space<vmem>>) attributes {dimension_semantics = [#tpu.dimension_semantics<arbitrary>], iteration_bounds = array<i64: 4>, scalar_prefetch = 0 : i64, scratch_operands = 1 : i64, tpu.core_type = #tpu.core_type<tc>, window_params = [{transform_indices = @transform_0, window_bounds = array<i64: 1, 37, 512>}, {pipeline_mode = #tpu.pipeline_mode<synchronous>, transform_indices = @transform_1, window_bounds = array<i64: 8, 37>}, {pipeline_mode = #tpu.pipeline_mode<synchronous>, transform_indices = @transform_2, window_bounds = array<i64: 4, 36>}, {pipeline_mode = #tpu.pipeline_mode<synchronous>, transform_indices = @transform_3, window_bounds = array<i64: 36, 512>}, {transform_indices = @transform_4, window_bounds = array<i64: 1, 4, 512>}, {pipeline_mode = #tpu.pipeline_mode<synchronous>, transform_indices = @transform_5, window_bounds = array<i64: 4, 512>}]} {
    %c0_i32 = arith.constant 0 : i32
    %0 = arith.cmpi eq, %arg0, %c0_i32 : i32
    %1 = arith.extui %0 : i1 to i32
    %c0_i32_0 = arith.constant 0 : i32
    %2 = arith.cmpi ne, %1, %c0_i32_0 : i32
    scf.if %2 {
      %cst_21 = arith.constant 0.000000e+00 : f32
      %37 = vector.broadcast %cst_21 : f32 to vector<36x546xf32>
      %c0_22 = arith.constant 0 : index
      %c0_23 = arith.constant 0 : index
      %38 = vector.load %arg7[%c0_22, %c0_23] : memref<36x546xf32, #tpu.memory_space<vmem>>, vector<36x546xf32>
      tpu.vector_store %arg7[%c0_22, %c0_23], %37 {strides = array<i32>} : memref<36x546xf32, #tpu.memory_space<vmem>>, vector<36x546xf32>,
    } else {
    }
    %c0 = arith.constant 0 : index
    %c0_1 = arith.constant 0 : index
    %3 = vector.load %arg2[%c0, %c0_1] : memref<8x37xf32, #tpu.memory_space<vmem>>, vector<8x37xf32>
    %c0_2 = arith.constant 0 : index
    %c0_3 = arith.constant 0 : index
    %c0_4 = arith.constant 0 : index
    %4 = vector.load %arg1[%c0_2, %c0_3, %c0_4] : memref<1x37x512xf32, #tpu.memory_space<vmem>>, vector<1x37x512xf32>
    %5 = vector.shape_cast %4 : vector<1x37x512xf32> to vector<37x512xf32>
    %cst = arith.constant dense<0.000000e+00> : vector<8x512xf32>
    %6 = tpu.matmul %3, %5, %cst {dimension_numbers = #tpu.dot_dimension_numbers<[1], [0], [0], [1], [0, 0, 1, 1], [], []>} : vector<8x37xf32>, vector<37x512xf32>, vector<8x512xf32> -> vector<8x512xf32>
    %c0_5 = arith.constant 0 : index
    %c17 = arith.constant 17 : index
    %7 = vector.load %arg7[%c0_5, %c17] : memref<36x546xf32, #tpu.memory_space<vmem>>, vector<36x512xf32>
    %c0_6 = arith.constant 0 : index
    %c0_7 = arith.constant 0 : index
    %8 = vector.load %arg4[%c0_6, %c0_7] : memref<36x512xf32, #tpu.memory_space<vmem>>, vector<36x512xf32>
    %9 = arith.mulf %7, %8 : vector<36x512xf32>
    %c0_8 = arith.constant 0 : index
    %c0_9 = arith.constant 0 : index
    %10 = vector.load %arg3[%c0_8, %c0_9] : memref<4x36xf32, #tpu.memory_space<vmem>>, vector<4x36xf32>
    %cst_10 = arith.constant dense<0.000000e+00> : vector<4x512xf32>
    %11 = tpu.matmul %10, %9, %cst_10 {dimension_numbers = #tpu.dot_dimension_numbers<[1], [0], [0], [1], [0, 0, 1, 1], [], []>} : vector<4x36xf32>, vector<36x512xf32>, vector<4x512xf32> -> vector<4x512xf32>
    %12 = vector.extract_strided_slice %6 {offsets = [0, 0], sizes = [4, 512], strides = [1, 1]} : vector<8x512xf32> to vector<4x512xf32>
    %13 = math.tanh %12 : vector<4x512xf32>
    %14 = vector.extract_strided_slice %6 {offsets = [4, 0], sizes = [4, 512], strides = [1, 1]} : vector<8x512xf32> to vector<4x512xf32>
    %15 = arith.addf %14, %11 : vector<4x512xf32>
    %16 = arith.negf %15 : vector<4x512xf32>
    %17 = math.exp %16 : vector<4x512xf32>
    %cst_11 = arith.constant 1.000000e+00 : f32
    %18 = vector.broadcast %cst_11 : f32 to vector<4x512xf32>
    %19 = arith.addf %18, %17 : vector<4x512xf32>
    %20 = arith.divf %18, %19 : vector<4x512xf32>
    %21 = arith.mulf %13, %20 : vector<4x512xf32>
    %c0_12 = arith.constant 0 : index
    %c0_13 = arith.constant 0 : index
    %c0_14 = arith.constant 0 : index
    %22 = vector.load %arg5[%c0_12, %c0_13, %c0_14] : memref<1x4x512xf32, #tpu.memory_space<vmem>>, vector<1x4x512xf32>
    %23 = vector.shape_cast %22 : vector<1x4x512xf32> to vector<4x512xf32>
    %24 = vector.shape_cast %21 : vector<4x512xf32> to vector<1x4x512xf32>
    tpu.vector_store %arg5[%c0_12, %c0_13, %c0_14], %24 {strides = array<i32>} : memref<1x4x512xf32, #tpu.memory_space<vmem>>, vector<1x4x512xf32>,
    %c0_15 = arith.constant 0 : index
    %c34 = arith.constant 34 : index
    %25 = vector.load %arg7[%c0_15, %c34] : memref<36x546xf32, #tpu.memory_space<vmem>>, vector<4x512xf32>
    tpu.vector_store %arg7[%c0_15, %c34], %20 {strides = array<i32>} : memref<36x546xf32, #tpu.memory_space<vmem>>, vector<4x512xf32>,
    %c4 = arith.constant 4 : index
    %c33 = arith.constant 33 : index
    %26 = vector.load %arg7[%c4, %c33] : memref<36x546xf32, #tpu.memory_space<vmem>>, vector<4x512xf32>
    tpu.vector_store %arg7[%c4, %c33], %20 {strides = array<i32>} : memref<36x546xf32, #tpu.memory_space<vmem>>, vector<4x512xf32>,
    %c8 = arith.constant 8 : index
    %c32 = arith.constant 32 : index
    %27 = vector.load %arg7[%c8, %c32] : memref<36x546xf32, #tpu.memory_space<vmem>>, vector<4x512xf32>
    tpu.vector_store %arg7[%c8, %c32], %20 {strides = array<i32>} : memref<36x546xf32, #tpu.memory_space<vmem>>, vector<4x512xf32>,
    %c12 = arith.constant 12 : index
    %c18 = arith.constant 18 : index
    %28 = vector.load %arg7[%c12, %c18] : memref<36x546xf32, #tpu.memory_space<vmem>>, vector<4x512xf32>
    tpu.vector_store %arg7[%c12, %c18], %20 {strides = array<i32>} : memref<36x546xf32, #tpu.memory_space<vmem>>, vector<4x512xf32>,
    %c16 = arith.constant 16 : index
    %c17_16 = arith.constant 17 : index
    %29 = vector.load %arg7[%c16, %c17_16] : memref<36x546xf32, #tpu.memory_space<vmem>>, vector<4x512xf32>
    tpu.vector_store %arg7[%c16, %c17_16], %20 {strides = array<i32>} : memref<36x546xf32, #tpu.memory_space<vmem>>, vector<4x512xf32>,
    %c20 = arith.constant 20 : index
    %c16_17 = arith.constant 16 : index
    %30 = vector.load %arg7[%c20, %c16_17] : memref<36x546xf32, #tpu.memory_space<vmem>>, vector<4x512xf32>
    tpu.vector_store %arg7[%c20, %c16_17], %20 {strides = array<i32>} : memref<36x546xf32, #tpu.memory_space<vmem>>, vector<4x512xf32>,
    %c24 = arith.constant 24 : index
    %c2 = arith.constant 2 : index
    %31 = vector.load %arg7[%c24, %c2] : memref<36x546xf32, #tpu.memory_space<vmem>>, vector<4x512xf32>
    tpu.vector_store %arg7[%c24, %c2], %20 {strides = array<i32>} : memref<36x546xf32, #tpu.memory_space<vmem>>, vector<4x512xf32>,
    %c28 = arith.constant 28 : index
    %c1 = arith.constant 1 : index
    %32 = vector.load %arg7[%c28, %c1] : memref<36x546xf32, #tpu.memory_space<vmem>>, vector<4x512xf32>
    tpu.vector_store %arg7[%c28, %c1], %20 {strides = array<i32>} : memref<36x546xf32, #tpu.memory_space<vmem>>, vector<4x512xf32>,
    %c32_18 = arith.constant 32 : index
    %c0_19 = arith.constant 0 : index
    %33 = vector.load %arg7[%c32_18, %c0_19] : memref<36x546xf32, #tpu.memory_space<vmem>>, vector<4x512xf32>
    tpu.vector_store %arg7[%c32_18, %c0_19], %20 {strides = array<i32>} : memref<36x546xf32, #tpu.memory_space<vmem>>, vector<4x512xf32>,
    %c3_i32 = arith.constant 3 : i32
    %34 = arith.cmpi eq, %arg0, %c3_i32 : i32
    %35 = arith.extui %34 : i1 to i32
    %c0_i32_20 = arith.constant 0 : i32
    %36 = arith.cmpi ne, %35, %c0_i32_20 : i32
    scf.if %36 {
      %c0_21 = arith.constant 0 : index
      %c0_22 = arith.constant 0 : index
      %37 = vector.load %arg6[%c0_21, %c0_22] : memref<4x512xf32, #tpu.memory_space<vmem>>, vector<4x512xf32>
      tpu.vector_store %arg6[%c0_21, %c0_22], %20 {strides = array<i32>} : memref<4x512xf32, #tpu.memory_space<vmem>>, vector<4x512xf32>,
    } else {
    }
    return
  }
  func.func @transform_0(%arg0: i32) -> (i32, i32, i32) {
    %c0_i32 = arith.constant 0 : i32
    %c0_i32_0 = arith.constant 0 : i32
    %c0_i32_1 = arith.constant 0 : i32
    return %arg0, %c0_i32, %c0_i32_0 : i32, i32, i32
  }
  func.func @transform_1(%arg0: i32) -> (i32, i32) {
    %c0_i32 = arith.constant 0 : i32
    %c0_i32_0 = arith.constant 0 : i32
    %c0_i32_1 = arith.constant 0 : i32
    return %c0_i32, %c0_i32_0 : i32, i32
  }
  func.func @transform_2(%arg0: i32) -> (i32, i32) {
    %c0_i32 = arith.constant 0 : i32
    %c0_i32_0 = arith.constant 0 : i32
    %c0_i32_1 = arith.constant 0 : i32
    return %c0_i32, %c0_i32_0 : i32, i32
  }
  func.func @transform_3(%arg0: i32) -> (i32, i32) {
    %c0_i32 = arith.constant 0 : i32
    %c0_i32_0 = arith.constant 0 : i32
    %c0_i32_1 = arith.constant 0 : i32
    return %c0_i32, %c0_i32_0 : i32, i32
  }
  func.func @transform_4(%arg0: i32) -> (i32, i32, i32) {
    %c0_i32 = arith.constant 0 : i32
    %c0_i32_0 = arith.constant 0 : i32
    %c0_i32_1 = arith.constant 0 : i32
    return %arg0, %c0_i32, %c0_i32_0 : i32, i32, i32
  }
  func.func @transform_5(%arg0: i32) -> (i32, i32) {
    %c0_i32 = arith.constant 0 : i32
    %c0_i32_0 = arith.constant 0 : i32
    %c0_i32_1 = arith.constant 0 : i32
    return %c0_i32, %c0_i32_0 : i32, i32
  }
}

</mosaic_0001>

<llo_original>
// kernel: tpu_custom_call.1
$region0: #{tpu_custom_call.1}
  #allocation0 [shape = 'u32[]', space=smem, size = 0x4, offset = 0x4, fixed_abs, tag = 'smem constant byte address 0x4 - core index']
  #allocation1 [shape = 'u32[144,128]{1,0:T(1,128)}', space=vmem, size = 0x12000, scoped, tag = 'internal scratch']
  #allocation2 [shape = 'f32[36,546]{1,0:T(8,128)}', space=vmem, size = 0x19000, scoped, tag = 'scratch operand']
  %s0 = inlined_call_operand.vmem [shape: f32[4,37,512], index: 0, kind: input, shape index: {}]
  %s1 = inlined_call_operand.vmem [shape: f32[8,37], index: 1, kind: input, shape index: {}]
  %s2 = inlined_call_operand.vmem [shape: f32[4,36], index: 2, kind: input, shape index: {}]
  %s3 = inlined_call_operand.vmem [shape: f32[36,512], index: 3, kind: input, shape index: {}]
  %s4 = inlined_call_operand.hbm [shape: f32[4,4,512], index: 4, kind: output, shape index: {0}]
  %s5 = inlined_call_operand.hbm [shape: f32[4,512], index: 5, kind: output, shape index: {1}]
  %6 = xla_tuple %s4, %s5
  %s7 = sld [smem:[#allocation0]]
  $region65: #{tpu_custom_call.1} parent=0
    _
  %s9 = ssub.s32 1, %s7
  %s10 = scalar_select 0, %s9, %s7
  $region1: #{tpu_custom_call.1} parent=0
    #allocation3 [shape = 'u8[16384]{0}', space=vmem, size = 0x4000, scoped, tag = 'output window, operand 0']
    #allocation4 [shape = 's32[2]{0}', space=sflag, size = 0x8, scoped, tag = 'scoped memory for tpu_custom_call.1']
    #allocation5 [shape = 'u8[8192]{0}', space=vmem, size = 0x2000, scoped, tag = 'output window, operand 1, single buffered']
    #allocation6 [shape = 's32[1]{0}', space=sflag, size = 0x4, scoped, tag = 'scoped memory for tpu_custom_call.1']
    %11 = vsyncpa [#allocation4], 0
    %s12 = scalar_lea.sflag [#allocation4], 1
    %13 = vsyncpa %s12, 0
    %14 = vsyncpa [#allocation6], 0
    loop: start=0, step=1, limit=6
    $region2: #{tpu_custom_call.1} parent=1 // loop_pre_header
      _
    $region3: #{tpu_custom_call.1} parent=1 // loop_header
      %s16 = sphi 0, %s20
      %p17 = scmp.ge.s32.totalorder %s16, 6
      %s26 = sphi 0, %s28
      %s29 = sphi 0, %s26
      %s30 = sphi 0, %s29
      %s46 = sphi 0, %s30
      %s50 = sphi 0, %s50
      %s52 = sphi 0, %s50
      %s53 = sphi 0, %s52
      %s67 = sphi 0, %s53
      %s71 = sphi 0, %s71
      %s73 = sphi 0, %s71
      %s74 = sphi 0, %s73
      %s88 = sphi 0, %s74
      %s92 = sphi 0, %s92
      %s94 = sphi 0, %s92
      %s95 = sphi 0, %s94
      %s109 = sphi 0, %s95
      %s115 = sphi 0, %s117
      %s118 = sphi 0, %s115
      %s119 = sphi 0, %s118
      %s135 = sphi 0, %s119
      %s139 = sphi 0, %s139
      %s141 = sphi 0, %s139
      %s142 = sphi 0, %s141
      %s156 = sphi 0, %s142
    $region4: #{tpu_custom_call.1} parent=1 // loop_header_branch
      %19 = sbr.rel (%p17) target = $region8
    $region5: #{tpu_custom_call.1} parent=1 // loop_body
      %s21 = ssub.s32 %s16, 1
      %s22 = ssub.s32 %s16, 2
      %s23 = sadd.s32 %s16, 1
      %s24 = ssub.s32 %s16, %s23
      %p25 = scmp.eq.s32.totalorder %s24, 0
      %s27 = sadd.s32 %s26, 1
      %s28 = scalar_select %p25, %s26, %s27
      %p31 = pneg %p25
      %p32 = scmp.eq.s32.totalorder %s16, 3
      %p33 = por %p31, %p32
      %p34 = scmp.ne.s32.totalorder %s26, %s29
      %p35 = scmp.eq.s32.totalorder %s16, 0
      %p36 = por %p34, %p35
      %p37 = scmp.ne.s32.totalorder %s26, %s29
      %p38 = scmp.eq.s32.totalorder %s21, 3
      %p39 = por %p37, %p38
      %p40 = scmp.ne.s32.totalorder %s29, %s30
      %p41 = scmp.eq.s32.totalorder %s21, 0
      %p42 = por %p40, %p41
      %p43 = scmp.ne.s32.totalorder %s29, %s30
      %p44 = scmp.eq.s32.totalorder %s22, 3
      %p45 = por %p43, %p44
      %p47 = scmp.ne.s32.totalorder %s30, %s46
      %p48 = scmp.eq.s32.totalorder %s22, 0
      %p49 = por %p47, %p48
      %s51 = sadd.s32 %s50, 1
      %p54 = scmp.eq.s32.totalorder %s16, 3
      %p55 = scmp.ne.s32.totalorder %s50, %s52
      %p56 = scmp.eq.s32.totalorder %s16, 0
      %p57 = por %p55, %p56
      %p58 = scmp.ne.s32.totalorder %s50, %s52
      %p59 = scmp.eq.s32.totalorder %s21, 3
      %p60 = por %p58, %p59
      %p61 = scmp.ne.s32.totalorder %s52, %s53
      %p62 = scmp.eq.s32.totalorder %s21, 0
      %p63 = por %p61, %p62
      %p64 = scmp.ne.s32.totalorder %s52, %s53
      %p65 = scmp.eq.s32.totalorder %s22, 3
      %p66 = por %p64, %p65
      %p68 = scmp.ne.s32.totalorder %s53, %s67
      %p69 = scmp.eq.s32.totalorder %s22, 0
      %p70 = por %p68, %p69
      %s72 = sadd.s32 %s71, 1
      %p75 = scmp.eq.s32.totalorder %s16, 3
      %p76 = scmp.ne.s32.totalorder %s71, %s73
      %p77 = scmp.eq.s32.totalorder %s16, 0
      %p78 = por %p76, %p77
      %p79 = scmp.ne.s32.totalorder %s71, %s73
      %p80 = scmp.eq.s32.totalorder %s21, 3
      %p81 = por %p79, %p80
      %p82 = scmp.ne.s32.totalorder %s73, %s74
      %p83 = scmp.eq.s32.totalorder %s21, 0
      %p84 = por %p82, %p83
      %p85 = scmp.ne.s32.totalorder %s73, %s74
      %p86 = scmp.eq.s32.totalorder %s22, 3
      %p87 = por %p85, %p86
      %p89 = scmp.ne.s32.totalorder %s74, %s88
      %p90 = scmp.eq.s32.totalorder %s22, 0
      %p91 = por %p89, %p90
      %s93 = sadd.s32 %s92, 1
      %p96 = scmp.eq.s32.totalorder %s16, 3
      %p97 = scmp.ne.s32.totalorder %s92, %s94
      %p98 = scmp.eq.s32.totalorder %s16, 0
      %p99 = por %p97, %p98
      %p100 = scmp.ne.s32.totalorder %s92, %s94
      %p101 = scmp.eq.s32.totalorder %s21, 3
      %p102 = por %p100, %p101
      %p103 = scmp.ne.s32.totalorder %s94, %s95
      %p104 = scmp.eq.s32.totalorder %s21, 0
      %p105 = por %p103, %p104
      %p106 = scmp.ne.s32.totalorder %s94, %s95
      %p107 = scmp.eq.s32.totalorder %s22, 3
      %p108 = por %p106, %p107
      %p110 = scmp.ne.s32.totalorder %s95, %s109
      %p111 = scmp.eq.s32.totalorder %s22, 0
      %p112 = por %p110, %p111
      %s113 = ssub.s32 %s16, %s23
      %p114 = scmp.eq.s32.totalorder %s113, 0
      %s116 = sadd.s32 %s115, 1
      %s117 = scalar_select %p114, %s115, %s116
      %p120 = pneg %p114
      %p121 = scmp.eq.s32.totalorder %s16, 3
      %p122 = por %p120, %p121
      %p123 = scmp.ne.s32.totalorder %s115, %s118
      %p124 = scmp.eq.s32.totalorder %s16, 0
      %p125 = por %p123, %p124
      %p126 = scmp.ne.s32.totalorder %s115, %s118
      %p127 = scmp.eq.s32.totalorder %s21, 3
      %p128 = por %p126, %p127
      %p129 = scmp.ne.s32.totalorder %s118, %s119
      %p130 = scmp.eq.s32.totalorder %s21, 0
      %p131 = por %p129, %p130
      %p132 = scmp.ne.s32.totalorder %s118, %s119
      %p133 = scmp.eq.s32.totalorder %s22, 3
      %p134 = por %p132, %p133
      %p136 = scmp.ne.s32.totalorder %s119, %s135
      %p137 = scmp.eq.s32.totalorder %s22, 0
      %p138 = por %p136, %p137
      %s140 = sadd.s32 %s139, 1
      %p143 = scmp.eq.s32.totalorder %s16, 3
      %p144 = scmp.ne.s32.totalorder %s139, %s141
      %p145 = scmp.eq.s32.totalorder %s16, 0
      %p146 = por %p144, %p145
      %p147 = scmp.ne.s32.totalorder %s139, %s141
      %p148 = scmp.eq.s32.totalorder %s21, 3
      %p149 = por %p147, %p148
      %p150 = scmp.ne.s32.totalorder %s141, %s142
      %p151 = scmp.eq.s32.totalorder %s21, 0
      %p152 = por %p150, %p151
      %p153 = scmp.ne.s32.totalorder %s141, %s142
      %p154 = scmp.eq.s32.totalorder %s22, 3
      %p155 = por %p153, %p154
      %p157 = scmp.ne.s32.totalorder %s142, %s156
      %p158 = scmp.eq.s32.totalorder %s22, 0
      %p159 = por %p157, %p158
      %p160 = scmp.le.s32.totalorder 1, %s16
      %p161 = scmp.lt.s32.totalorder %s16, 5
      %p162 = pnand %p160, %p161
      %p163 = pneg %p162
      // Predicated region
      $region9: #{tpu_custom_call.1} parent=5 // pred_check
        _
      $region10: #{tpu_custom_call.1} parent=5 // pred_check_branch
        %165 = sbr.rel (%p162) target = $region12
      $region11: #{tpu_custom_call.1} parent=5 // pred_region
        %s166 = ssub.s32 %s16, 1
        // Predicated region
        $region13: #{tpu_custom_call.1} parent=11 // pred_check
          %p167 = pneg %p63
        $region14: #{tpu_custom_call.1} parent=11 // pred_check_branch
          %169 = sbr.rel (%p167) target = $region16
        $region15: #{tpu_custom_call.1} parent=11 // pred_region
          _
        $region16: #{tpu_custom_call.1} parent=11 // pred_fallthru
          _
        // Predicated region
        $region17: #{tpu_custom_call.1} parent=11 // pred_check
          %p170 = pneg %p84
        $region18: #{tpu_custom_call.1} parent=11 // pred_check_branch
          %172 = sbr.rel (%p170) target = $region20
        $region19: #{tpu_custom_call.1} parent=11 // pred_region
          _
        $region20: #{tpu_custom_call.1} parent=11 // pred_fallthru
          _
        // Predicated region
        $region21: #{tpu_custom_call.1} parent=11 // pred_check
          %p173 = pneg %p105
        $region22: #{tpu_custom_call.1} parent=11 // pred_check_branch
          %175 = sbr.rel (%p173) target = $region24
        $region23: #{tpu_custom_call.1} parent=11 // pred_region
          _
        $region24: #{tpu_custom_call.1} parent=11 // pred_fallthru
          _
      $region12: #{tpu_custom_call.1} parent=5 // pred_fallthru
        _
      %p176 = scmp.lt.s32.totalorder %s16, 4
      // Predicated region
      $region25: #{tpu_custom_call.1} parent=5 // pred_check
        %p177 = pneg %p176
      $region26: #{tpu_custom_call.1} parent=5 // pred_check_branch
        %179 = sbr.rel (%p177) target = $region28
      $region27: #{tpu_custom_call.1} parent=5 // pred_region
        // Predicated region
        $region29: #{tpu_custom_call.1} parent=27 // pred_check
          %p180 = pneg %p36
        $region30: #{tpu_custom_call.1} parent=27 // pred_check_branch
          %182 = sbr.rel (%p180) target = $region32
        $region31: #{tpu_custom_call.1} parent=27 // pred_region
          %p183 = scmp.lt.s32.totalorder %s16, 3
          %s184 = scalar_select %p183, %s16, 3
          %s185 = smul.addr %s184, 20
          %s186 = smul.addr %s185, 8
          %s187 = scalar_lea.vmem %s0, %s186
        $region32: #{tpu_custom_call.1} parent=27 // pred_fallthru
          _
      $region28: #{tpu_custom_call.1} parent=5 // pred_fallthru
        _
      %p188 = scmp.le.s32.totalorder 1, %s16
      %p189 = scmp.lt.s32.totalorder %s16, 5
      %p190 = pnand %p188, %p189
      %p191 = pneg %p190
      // Predicated region
      $region33: #{tpu_custom_call.1} parent=5 // pred_check
        _
      $region34: #{tpu_custom_call.1} parent=5 // pred_check_branch
        %193 = sbr.rel (%p190) target = $region36
      $region35: #{tpu_custom_call.1} parent=5 // pred_region
        %s194 = ssub.s32 %s16, 1
        %p195 = scmp.lt.s32.totalorder %s21, 3
        %s196 = scalar_select %p195, %s21, 3
        %s197 = smul.addr %s196, 20
        %s198 = smul.addr %s197, 8
        %s199 = scalar_lea.vmem %s0, %s198
        %p200 = pneg %p42
        %p201 = pneg %p39
        %p202 = pneg %p63
        %p203 = pneg %p60
        %p204 = pneg %p84
        %p205 = pneg %p81
        %p206 = pneg %p105
        %p207 = pneg %p102
        %p208 = pneg %p131
        %p209 = pneg %p128
        %s210 = sand.u32 %s118, 1
        %s211 = scalar_lea.sflag [#allocation4], %s210
        %s212 = sand.u32 %s118, 1
        %s213 = smul.addr %s212, 16
        %s214 = scalar_lea.vmem [#allocation3], %s213
        %p215 = pneg %p152
        %p216 = pneg %p149
        %p217 = scmp.lt.s32.totalorder %s21, 3
        %s218 = scalar_select %p217, %s21, 3
        %s219 = smul.addr %s218, 20
        %s220 = smul.addr %s219, 8
        %s221 = scalar_lea.vmem %s0, %s220
        %p222 = scmp.eq.s32.totalorder %s21, 0
        // Predicated region
        $region37: #{tpu_custom_call.1} parent=35 // pred_check
          %p223 = pneg %p222
        $region38: #{tpu_custom_call.1} parent=35 // pred_check_branch
          %225 = sbr.rel (%p223) target = $region40
        $region39: #{tpu_custom_call.1} parent=35 // pred_region
          %226 = vst [vmem:[#allocation2] sm:$0xff] 0.0
          %227 = vst [vmem:[#allocation2 + $0x8] sm:$0xff] 0.0
          %228 = vst [vmem:[#allocation2 + $0x10] sm:$0xff] 0.0
          %229 = vst [vmem:[#allocation2 + $0x18] sm:$0xff] 0.0
          %vm230 = vcmask 277504
          %231 = vst.msk [vmem:[#allocation2 + $0x20] sm:$0xff] %vm230, 0.0
          %232 = vst [vmem:[#allocation2 + $0x28] sm:$0xff] 0.0
          %233 = vst [vmem:[#allocation2 + $0x30] sm:$0xff] 0.0
          %234 = vst [vmem:[#allocation2 + $0x38] sm:$0xff] 0.0
          %235 = vst [vmem:[#allocation2 + $0x40] sm:$0xff] 0.0
          %236 = vst.msk [vmem:[#allocation2 + $0x48] sm:$0xff] %vm230, 0.0
          %237 = vst [vmem:[#allocation2 + $0x50] sm:$0xff] 0.0
          %238 = vst [vmem:[#allocation2 + $0x58] sm:$0xff] 0.0
          %239 = vst [vmem:[#allocation2 + $0x60] sm:$0xff] 0.0
          %240 = vst [vmem:[#allocation2 + $0x68] sm:$0xff] 0.0
          %241 = vst.msk [vmem:[#allocation2 + $0x70] sm:$0xff] %vm230, 0.0
          %242 = vst [vmem:[#allocation2 + $0x78] sm:$0xff] 0.0
          %243 = vst [vmem:[#allocation2 + $0x80] sm:$0xff] 0.0
          %244 = vst [vmem:[#allocation2 + $0x88] sm:$0xff] 0.0
          %245 = vst [vmem:[#allocation2 + $0x90] sm:$0xff] 0.0
          %246 = vst.msk [vmem:[#allocation2 + $0x98] sm:$0xff] %vm230, 0.0
          %247 = vst [vmem:[#allocation2 + $0xa0] sm:$0xf] 0.0
          %248 = vst [vmem:[#allocation2 + $0xa8] sm:$0xf] 0.0
          %249 = vst [vmem:[#allocation2 + $0xb0] sm:$0xf] 0.0
          %250 = vst [vmem:[#allocation2 + $0xb8] sm:$0xf] 0.0
          %vm251 = vcmask 273408
          %252 = vst.msk [vmem:[#allocation2 + $0xc0] sm:$0xf] %vm251, 0.0
        $region40: #{tpu_custom_call.1} parent=35 // pred_fallthru
          _
        %v253 = vld [vmem:[%s1] sm:$0xff]
        %v254 = vld [vmem:[%s221] sm:$0xff]
        %v255 = vld [vmem:[%s221 + $0x8] sm:$0xff]
        %v256 = vld [vmem:[%s221 + $0x10] sm:$0xff]
        %v257 = vld [vmem:[%s221 + $0x18] sm:$0xff]
        %v258 = vld [vmem:[%s221 + $0x20] sm:$0xff]
        %v259 = vld [vmem:[%s221 + $0x28] sm:$0xff]
        %v260 = vld [vmem:[%s221 + $0x30] sm:$0xff]
        %v261 = vld [vmem:[%s221 + $0x38] sm:$0xff]
        %v262 = vld [vmem:[%s221 + $0x40] sm:$0xff]
        %v263 = vld [vmem:[%s221 + $0x48] sm:$0xff]
        %v264 = vld [vmem:[%s221 + $0x50] sm:$0xff]
        %v265 = vld [vmem:[%s221 + $0x58] sm:$0xff]
        %v266 = vld [vmem:[%s221 + $0x60] sm:$0xff]
        %v267 = vld [vmem:[%s221 + $0x68] sm:$0xff]
        %v268 = vld [vmem:[%s221 + $0x70] sm:$0xff]
        %v269 = vld [vmem:[%s221 + $0x78] sm:$0xff]
        %v270 = vld [vmem:[%s221 + $0x80] sm:$0x1f]
        %v271 = vld [vmem:[%s221 + $0x88] sm:$0x1f]
        %v272 = vld [vmem:[%s221 + $0x90] sm:$0x1f]
        %v273 = vld [vmem:[%s221 + $0x98] sm:$0x1f]
        %vm274 = vcmask 302080
        %v276 = vsel %vm274, %v253, 0
        %vm278 = vcmask 1044480
        %v280 = vsel %vm278, %v270, 0
        %v283 = vsel %vm278, %v271, 0
        %v286 = vsel %vm278, %v272, 0
        %v289 = vsel %vm278, %v273, 0
        %291 = vmatprep.subr.mxu0 0.0
        %292 = vmatpush1.msra.mxu0 0.0
        %293 = vmatprep.subr.mxu0 0.0
        %294 = vmatpush1.msra.mxu0 0.0
        %295 = vmatprep.subr.mxu0 0.0
        %296 = vmatpush1.msra.mxu0 0.0
        %297 = vmatprep.subr.mxu0 0.0
        %298 = vmatpush1.msra.mxu0 0.0
        %299 = vmatprep.subr.mxu0 0.0
        %300 = vmatpush1.msra.mxu0 0.0
        %301 = vmatprep.subr.mxu0 0.0
        %302 = vmatpush1.msra.mxu0 0.0
        %303 = vmatprep.subr.mxu0 0.0
        %304 = vmatpush1.msra.mxu0 0.0
        %305 = vmatprep.subr.mxu0 0.0
        %306 = vmatpush1.msra.mxu0 0.0
        %307 = vmatprep.subr.mxu0 0.0
        %308 = vmatpush1.msra.mxu0 0.0
        %309 = vmatprep.subr.mxu0 0.0
        %310 = vmatpush1.msra.mxu0 0.0
        %311 = vmatprep.subr.mxu0 0.0
        %312 = vmatpush1.msra.mxu0 0.0
        %313 = vmatprep.subr.mxu0 %v283
        %314 = vmatpush1.msra.mxu0 %v280
        %315 = vmatprep.subr.mxu0 %v267
        %316 = vmatpush1.msra.mxu0 %v266
        %317 = vmatprep.subr.mxu0 %v263
        %318 = vmatpush1.msra.mxu0 %v262
        %319 = vmatprep.subr.mxu0 %v259
        %320 = vmatpush1.msra.mxu0 %v258
        %321 = vmatprep.subr.mxu0 %v255
        %322 = vmatpush1.msra.mxu0 %v254
        %323 = vmatprep.subr.mxu0 0.0
        %324 = vmatpush2.msra.mxu0 0.0
        %325 = vmatprep.subr.mxu0 0.0
        %326 = vmatpush2.msra.mxu0 0.0
        %327 = vmatprep.subr.mxu0 0.0
        %328 = vmatpush2.msra.mxu0 0.0
        %329 = vmatprep.subr.mxu0 0.0
        %330 = vmatpush2.msra.mxu0 0.0
        %331 = vmatprep.subr.mxu0 0.0
        %332 = vmatpush2.msra.mxu0 0.0
        %333 = vmatprep.subr.mxu0 0.0
        %334 = vmatpush2.msra.mxu0 0.0
        %335 = vmatprep.subr.mxu0 0.0
        %336 = vmatpush2.msra.mxu0 0.0
        %337 = vmatprep.subr.mxu0 0.0
        %338 = vmatpush2.msra.mxu0 0.0
        %339 = vmatprep.subr.mxu0 0.0
        %340 = vmatpush2.msra.mxu0 0.0
        %341 = vmatprep.subr.mxu0 0.0
        %342 = vmatpush2.msra.mxu0 0.0
        %343 = vmatprep.subr.mxu0 0.0
        %344 = vmatpush2.msra.mxu0 0.0
        %345 = vmatprep.subr.mxu0 0.0
        %346 = vmatpush2.msra.mxu0 0.0
        %347 = vmatprep.subr.mxu0 0.0
        %348 = vmatpush2.msra.mxu0 0.0
        %349 = vmatprep.subr.mxu0 0.0
        %350 = vmatpush2.msra.mxu0 0.0
        %351 = vmatprep.subr.mxu0 0.0
        %352 = vmatpush2.msra.mxu0 0.0
        %353 = vmatprep.subr.mxu0 0.0
        %354 = vmatpush2.msra.mxu0 0.0
        %355 = vmatprep.mubr.f32.mxu0 0.0
        %356 = vmatmul.mubr.f32.gmra.mxu0 %v276
        %v357 = vpop.f32.mrf.mxu0
        %v358 = vadd.f32 0.0, %v357
        %v359 = vpop.f32.mrf.mxu0
        %v360 = vadd.f32 0.0, %v359
        %361 = vdwg.mxu0
        %362 = vmatprep.subr.mxu0 0.0
        %363 = vmatpush1.msra.mxu0 0.0
        %364 = vmatprep.subr.mxu0 0.0
        %365 = vmatpush1.msra.mxu0 0.0
        %366 = vmatprep.subr.mxu0 0.0
        %367 = vmatpush1.msra.mxu0 0.0
        %368 = vmatprep.subr.mxu0 0.0
        %369 = vmatpush1.msra.mxu0 0.0
        %370 = vmatprep.subr.mxu0 0.0
        %371 = vmatpush1.msra.mxu0 0.0
        %372 = vmatprep.subr.mxu0 0.0
        %373 = vmatpush1.msra.mxu0 0.0
        %374 = vmatprep.subr.mxu0 0.0
        %375 = vmatpush1.msra.mxu0 0.0
        %376 = vmatprep.subr.mxu0 0.0
        %377 = vmatpush1.msra.mxu0 0.0
        %378 = vmatprep.subr.mxu0 0.0
        %379 = vmatpush1.msra.mxu0 0.0
        %380 = vmatprep.subr.mxu0 0.0
        %381 = vmatpush1.msra.mxu0 0.0
        %382 = vmatprep.subr.mxu0 0.0
        %383 = vmatpush1.msra.mxu0 0.0
        %384 = vmatprep.subr.mxu0 %v289
        %385 = vmatpush1.msra.mxu0 %v286
        %386 = vmatprep.subr.mxu0 %v269
        %387 = vmatpush1.msra.mxu0 %v268
        %388 = vmatprep.subr.mxu0 %v265
        %389 = vmatpush1.msra.mxu0 %v264
        %390 = vmatprep.subr.mxu0 %v261
        %391 = vmatpush1.msra.mxu0 %v260
        %392 = vmatprep.subr.mxu0 %v257
        %393 = vmatpush1.msra.mxu0 %v256
        %394 = vmatprep.subr.mxu0 0.0
        %395 = vmatpush2.msra.mxu0 0.0
        %396 = vmatprep.subr.mxu0 0.0
        %397 = vmatpush2.msra.mxu0 0.0
        %398 = vmatprep.subr.mxu0 0.0
        %399 = vmatpush2.msra.mxu0 0.0
        %400 = vmatprep.subr.mxu0 0.0
        %401 = vmatpush2.msra.mxu0 0.0
        %402 = vmatprep.subr.mxu0 0.0
        %403 = vmatpush2.msra.mxu0 0.0
        %404 = vmatprep.subr.mxu0 0.0
        %405 = vmatpush2.msra.mxu0 0.0
        %406 = vmatprep.subr.mxu0 0.0
        %407 = vmatpush2.msra.mxu0 0.0
        %408 = vmatprep.subr.mxu0 0.0
        %409 = vmatpush2.msra.mxu0 0.0
        %410 = vmatprep.subr.mxu0 0.0
        %411 = vmatpush2.msra.mxu0 0.0
        %412 = vmatprep.subr.mxu0 0.0
        %413 = vmatpush2.msra.mxu0 0.0
        %414 = vmatprep.subr.mxu0 0.0
        %415 = vmatpush2.msra.mxu0 0.0
        %416 = vmatprep.subr.mxu0 0.0
        %417 = vmatpush2.msra.mxu0 0.0
        %418 = vmatprep.subr.mxu0 0.0
        %419 = vmatpush2.msra.mxu0 0.0
        %420 = vmatprep.subr.mxu0 0.0
        %421 = vmatpush2.msra.mxu0 0.0
        %422 = vmatprep.subr.mxu0 0.0
        %423 = vmatpush2.msra.mxu0 0.0
        %424 = vmatprep.subr.mxu0 0.0
        %425 = vmatpush2.msra.mxu0 0.0
        %426 = vmatprep.mubr.f32.mxu0 0.0
        %427 = vmatmul.mubr.f32.gmra.mxu0 %v276
        %v428 = vpop.f32.mrf.mxu0
        %v429 = vadd.f32 0.0, %v428
        %v430 = vpop.f32.mrf.mxu0
        %v431 = vadd.f32 0.0, %v430
        %432 = vdwg.mxu0
        %v433 = vld [vmem:[#allocation2] sm:$0xff]
        %v434 = vld [vmem:[#allocation2 + $0x8] sm:$0xff]
        %v435 = vld [vmem:[#allocation2 + $0x10] sm:$0xff]
        %v436 = vld [vmem:[#allocation2 + $0x18] sm:$0xff]
        %v437 = vld [vmem:[#allocation2 + $0x20] sm:$0xff]
        %v438 = vld [vmem:[#allocation2 + $0x28] sm:$0xff]
        %v439 = vld [vmem:[#allocation2 + $0x30] sm:$0xff]
        %v440 = vld [vmem:[#allocation2 + $0x38] sm:$0xff]
        %v441 = vld [vmem:[#allocation2 + $0x40] sm:$0xff]
        %v442 = vld [vmem:[#allocation2 + $0x48] sm:$0xff]
        %v443 = vld [vmem:[#allocation2 + $0x50] sm:$0xff]
        %v444 = vld [vmem:[#allocation2 + $0x58] sm:$0xff]
        %v445 = vld [vmem:[#allocation2 + $0x60] sm:$0xff]
        %v446 = vld [vmem:[#allocation2 + $0x68] sm:$0xff]
        %v447 = vld [vmem:[#allocation2 + $0x70] sm:$0xff]
        %v448 = vld [vmem:[#allocation2 + $0x78] sm:$0xff]
        %v449 = vld [vmem:[#allocation2 + $0x80] sm:$0xff]
        %v450 = vld [vmem:[#allocation2 + $0x88] sm:$0xff]
        %v451 = vld [vmem:[#allocation2 + $0x90] sm:$0xff]
        %v452 = vld [vmem:[#allocation2 + $0x98] sm:$0xff]
        %v453 = vld [vmem:[#allocation2 + $0xa0] sm:$0xf]
        %v454 = vld [vmem:[#allocation2 + $0xa8] sm:$0xf]
        %v455 = vld [vmem:[#allocation2 + $0xb0] sm:$0xf]
        %v456 = vld [vmem:[#allocation2 + $0xb8] sm:$0xf]
        %v457 = vld [vmem:[#allocation2 + $0xc0] sm:$0xf]
        %v458 = vld [vmem:[%s3] sm:$0xff]
        %v459 = vld [vmem:[%s3 + $0x8] sm:$0xff]
        %v460 = vld [vmem:[%s3 + $0x10] sm:$0xff]
        %v461 = vld [vmem:[%s3 + $0x18] sm:$0xff]
        %v462 = vld [vmem:[%s3 + $0x20] sm:$0xff]
        %v463 = vld [vmem:[%s3 + $0x28] sm:$0xff]
        %v464 = vld [vmem:[%s3 + $0x30] sm:$0xff]
        %v465 = vld [vmem:[%s3 + $0x38] sm:$0xff]
        %v466 = vld [vmem:[%s3 + $0x40] sm:$0xff]
        %v467 = vld [vmem:[%s3 + $0x48] sm:$0xff]
        %v468 = vld [vmem:[%s3 + $0x50] sm:$0xff]
        %v469 = vld [vmem:[%s3 + $0x58] sm:$0xff]
        %v470 = vld [vmem:[%s3 + $0x60] sm:$0xff]
        %v471 = vld [vmem:[%s3 + $0x68] sm:$0xff]
        %v472 = vld [vmem:[%s3 + $0x70] sm:$0xff]
        %v473 = vld [vmem:[%s3 + $0x78] sm:$0xff]
        %v474 = vld [vmem:[%s3 + $0x80] sm:$0xf]
        %v475 = vld [vmem:[%s3 + $0x88] sm:$0xf]
        %v476 = vld [vmem:[%s3 + $0x90] sm:$0xf]
        %v477 = vld [vmem:[%s3 + $0x98] sm:$0xf]
        %498 = vrot.lane.b32.xlu0 %v458, 17
        %v499 = vpop.permute.xlu0 %498
        %500 = vrot.lane.b32.xlu0 %v459, 17
        %v501 = vpop.permute.xlu0 %500
        %502 = vrot.lane.b32.xlu0 %v460, 17
        %v503 = vpop.permute.xlu0 %502
        %504 = vrot.lane.b32.xlu0 %v461, 17
        %v505 = vpop.permute.xlu0 %504
        %506 = vrot.lane.b32.xlu0 %v462, 17
        %v507 = vpop.permute.xlu0 %506
        %508 = vrot.lane.b32.xlu0 %v463, 17
        %v509 = vpop.permute.xlu0 %508
        %510 = vrot.lane.b32.xlu0 %v464, 17
        %v511 = vpop.permute.xlu0 %510
        %512 = vrot.lane.b32.xlu0 %v465, 17
        %v513 = vpop.permute.xlu0 %512
        %514 = vrot.lane.b32.xlu0 %v466, 17
        %v515 = vpop.permute.xlu0 %514
        %516 = vrot.lane.b32.xlu0 %v467, 17
        %v517 = vpop.permute.xlu0 %516
        %518 = vrot.lane.b32.xlu0 %v468, 17
        %v519 = vpop.permute.xlu0 %518
        %520 = vrot.lane.b32.xlu0 %v469, 17
        %v521 = vpop.permute.xlu0 %520
        %522 = vrot.lane.b32.xlu0 %v470, 17
        %v523 = vpop.permute.xlu0 %522
        %524 = vrot.lane.b32.xlu0 %v471, 17
        %v525 = vpop.permute.xlu0 %524
        %526 = vrot.lane.b32.xlu0 %v472, 17
        %v527 = vpop.permute.xlu0 %526
        %528 = vrot.lane.b32.xlu0 %v473, 17
        %v529 = vpop.permute.xlu0 %528
        %530 = vrot.lane.b32.xlu0 %v474, 17
        %v531 = vpop.permute.xlu0 %530
        %532 = vrot.lane.b32.xlu0 %v475, 17
        %v533 = vpop.permute.xlu0 %532
        %534 = vrot.lane.b32.xlu0 %v476, 17
        %v535 = vpop.permute.xlu0 %534
        %536 = vrot.lane.b32.xlu0 %v477, 17
        %v537 = vpop.permute.xlu0 %536
        %vm538 = vcmask 138240
        %v539 = vsel %vm538, %v499, %v501
        %v540 = vsel %vm538, %v501, %v503
        %v541 = vsel %vm538, %v503, %v505
        %v542 = vsel %vm538, %v507, %v509
        %v543 = vsel %vm538, %v509, %v511
        %v544 = vsel %vm538, %v511, %v513
        %v545 = vsel %vm538, %v515, %v517
        %v546 = vsel %vm538, %v517, %v519
        %v547 = vsel %vm538, %v519, %v521
        %v548 = vsel %vm538, %v523, %v525
        %v549 = vsel %vm538, %v525, %v527
        %v550 = vsel %vm538, %v527, %v529
        %v551 = vsel %vm538, %v531, %v533
        %v552 = vsel %vm538, %v533, %v535
        %v553 = vsel %vm538, %v535, %v537
        %v579 = vmul.f32 %v433, %v499
        %v580 = vmul.f32 %v434, %v539
        %v581 = vmul.f32 %v435, %v540
        %v582 = vmul.f32 %v436, %v541
        %v583 = vmul.f32 %v437, %v505
        %v584 = vmul.f32 %v438, %v507
        %v585 = vmul.f32 %v439, %v542
        %v586 = vmul.f32 %v440, %v543
        %v587 = vmul.f32 %v441, %v544
        %v588 = vmul.f32 %v442, %v513
        %v589 = vmul.f32 %v443, %v515
        %v590 = vmul.f32 %v444, %v545
        %v591 = vmul.f32 %v445, %v546
        %v592 = vmul.f32 %v446, %v547
        %v593 = vmul.f32 %v447, %v521
        %v594 = vmul.f32 %v448, %v523
        %v595 = vmul.f32 %v449, %v548
        %v596 = vmul.f32 %v450, %v549
        %v597 = vmul.f32 %v451, %v550
        %v598 = vmul.f32 %v452, %v529
        %v599 = vmul.f32 %v453, %v531
        %v600 = vmul.f32 %v454, %v551
        %v601 = vmul.f32 %v455, %v552
        %v602 = vmul.f32 %v456, %v553
        %v603 = vmul.f32 %v457, %v537
        %v604 = vld [vmem:[%s2] sm:$0xf]
        %630 = vrot.lane.b32.xlu0 %v579, 111
        %v631 = vpop.permute.xlu0 %630
        %632 = vrot.lane.b32.xlu0 %v580, 111
        %v633 = vpop.permute.xlu0 %632
        %634 = vrot.lane.b32.xlu0 %v581, 111
        %v635 = vpop.permute.xlu0 %634
        %636 = vrot.lane.b32.xlu0 %v582, 111
        %v637 = vpop.permute.xlu0 %636
        %638 = vrot.lane.b32.xlu0 %v583, 111
        %v639 = vpop.permute.xlu0 %638
        %640 = vrot.lane.b32.xlu0 %v584, 111
        %v641 = vpop.permute.xlu0 %640
        %642 = vrot.lane.b32.xlu0 %v585, 111
        %v643 = vpop.permute.xlu0 %642
        %644 = vrot.lane.b32.xlu0 %v586, 111
        %v645 = vpop.permute.xlu0 %644
        %646 = vrot.lane.b32.xlu0 %v587, 111
        %v647 = vpop.permute.xlu0 %646
        %648 = vrot.lane.b32.xlu0 %v588, 111
        %v649 = vpop.permute.xlu0 %648
        %650 = vrot.lane.b32.xlu0 %v589, 111
        %v651 = vpop.permute.xlu0 %650
        %652 = vrot.lane.b32.xlu0 %v590, 111
        %v653 = vpop.permute.xlu0 %652
        %654 = vrot.lane.b32.xlu0 %v591, 111
        %v655 = vpop.permute.xlu0 %654
        %656 = vrot.lane.b32.xlu0 %v592, 111
        %v657 = vpop.permute.xlu0 %656
        %658 = vrot.lane.b32.xlu0 %v593, 111
        %v659 = vpop.permute.xlu0 %658
        %660 = vrot.lane.b32.xlu0 %v594, 111
        %v661 = vpop.permute.xlu0 %660
        %662 = vrot.lane.b32.xlu0 %v595, 111
        %v663 = vpop.permute.xlu0 %662
        %664 = vrot.lane.b32.xlu0 %v596, 111
        %v665 = vpop.permute.xlu0 %664
        %666 = vrot.lane.b32.xlu0 %v597, 111
        %v667 = vpop.permute.xlu0 %666
        %668 = vrot.lane.b32.xlu0 %v598, 111
        %v669 = vpop.permute.xlu0 %668
        %670 = vrot.lane.b32.xlu0 %v599, 111
        %v671 = vpop.permute.xlu0 %670
        %672 = vrot.lane.b32.xlu0 %v600, 111
        %v673 = vpop.permute.xlu0 %672
        %674 = vrot.lane.b32.xlu0 %v601, 111
        %v675 = vpop.permute.xlu0 %674
        %676 = vrot.lane.b32.xlu0 %v602, 111
        %v677 = vpop.permute.xlu0 %676
        %678 = vrot.lane.b32.xlu0 %v603, 111
        %v679 = vpop.permute.xlu0 %678
        %vm680 = vcmask 908288
        %v681 = vsel %vm680, %v631, %v633
        %v682 = vsel %vm680, %v633, %v635
        %v683 = vsel %vm680, %v635, %v637
        %v684 = vsel %vm680, %v637, %v639
        %v685 = vsel %vm680, %v641, %v643
        %v686 = vsel %vm680, %v643, %v645
        %v687 = vsel %vm680, %v645, %v647
        %v688 = vsel %vm680, %v647, %v649
        %v689 = vsel %vm680, %v651, %v653
        %v690 = vsel %vm680, %v653, %v655
        %v691 = vsel %vm680, %v655, %v657
        %v692 = vsel %vm680, %v657, %v659
        %v693 = vsel %vm680, %v661, %v663
        %v694 = vsel %vm680, %v663, %v665
        %v695 = vsel %vm680, %v665, %v667
        %v696 = vsel %vm680, %v667, %v669
        %v697 = vsel %vm680, %v671, %v673
        %v698 = vsel %vm680, %v673, %v675
        %v699 = vsel %vm680, %v675, %v677
        %v700 = vsel %vm680, %v677, %v679
        %vm717 = vcmask 293888
        %v719 = vsel %vm717, %v604, 0
        %vm721 = vcmask 1043456
        %v722 = vsel %vm721, %v697, 0
        %v724 = vsel %vm721, %v698, 0
        %v726 = vsel %vm721, %v699, 0
        %v728 = vsel %vm721, %v700, 0
        %730 = vmatprep.subr.mxu0 0.0
        %731 = vmatpush1.msra.mxu0 0.0
        %732 = vmatprep.subr.mxu0 0.0
        %733 = vmatpush1.msra.mxu0 0.0
        %734 = vmatprep.subr.mxu0 0.0
        %735 = vmatpush1.msra.mxu0 0.0
        %736 = vmatprep.subr.mxu0 0.0
        %737 = vmatpush1.msra.mxu0 0.0
        %738 = vmatprep.subr.mxu0 0.0
        %739 = vmatpush1.msra.mxu0 0.0
        %740 = vmatprep.subr.mxu0 0.0
        %741 = vmatpush1.msra.mxu0 0.0
        %742 = vmatprep.subr.mxu0 0.0
        %743 = vmatpush1.msra.mxu0 0.0
        %744 = vmatprep.subr.mxu0 0.0
        %745 = vmatpush1.msra.mxu0 0.0
        %746 = vmatprep.subr.mxu0 0.0
        %747 = vmatpush1.msra.mxu0 0.0
        %748 = vmatprep.subr.mxu0 0.0
        %749 = vmatpush1.msra.mxu0 0.0
        %750 = vmatprep.subr.mxu0 0.0
        %751 = vmatpush1.msra.mxu0 0.0
        %752 = vmatprep.subr.mxu0 %v724
        %753 = vmatpush1.msra.mxu0 %v722
        %754 = vmatprep.subr.mxu0 %v694
        %755 = vmatpush1.msra.mxu0 %v693
        %756 = vmatprep.subr.mxu0 %v690
        %757 = vmatpush1.msra.mxu0 %v689
        %758 = vmatprep.subr.mxu0 %v686
        %759 = vmatpush1.msra.mxu0 %v685
        %760 = vmatprep.subr.mxu0 %v682
        %761 = vmatpush1.msra.mxu0 %v681
        %762 = vmatprep.subr.mxu0 0.0
        %763 = vmatpush2.msra.mxu0 0.0
        %764 = vmatprep.subr.mxu0 0.0
        %765 = vmatpush2.msra.mxu0 0.0
        %766 = vmatprep.subr.mxu0 0.0
        %767 = vmatpush2.msra.mxu0 0.0
        %768 = vmatprep.subr.mxu0 0.0
        %769 = vmatpush2.msra.mxu0 0.0
        %770 = vmatprep.subr.mxu0 0.0
        %771 = vmatpush2.msra.mxu0 0.0
        %772 = vmatprep.subr.mxu0 0.0
        %773 = vmatpush2.msra.mxu0 0.0
        %774 = vmatprep.subr.mxu0 0.0
        %775 = vmatpush2.msra.mxu0 0.0
        %776 = vmatprep.subr.mxu0 0.0
        %777 = vmatpush2.msra.mxu0 0.0
        %778 = vmatprep.subr.mxu0 0.0
        %779 = vmatpush2.msra.mxu0 0.0
        %780 = vmatprep.subr.mxu0 0.0
        %781 = vmatpush2.msra.mxu0 0.0
        %782 = vmatprep.subr.mxu0 0.0
        %783 = vmatpush2.msra.mxu0 0.0
        %784 = vmatprep.subr.mxu0 0.0
        %785 = vmatpush2.msra.mxu0 0.0
        %786 = vmatprep.subr.mxu0 0.0
        %787 = vmatpush2.msra.mxu0 0.0
        %788 = vmatprep.subr.mxu0 0.0
        %789 = vmatpush2.msra.mxu0 0.0
        %790 = vmatprep.subr.mxu0 0.0
        %791 = vmatpush2.msra.mxu0 0.0
        %792 = vmatprep.subr.mxu0 0.0
        %793 = vmatpush2.msra.mxu0 0.0
        %794 = vmatprep.mubr.f32.mxu0 0.0
        %795 = vmatmul.mubr.f32.gmra.mxu0 %v719
        %v796 = vpop.f32.mrf.mxu0
        %v797 = vadd.f32 0.0, %v796
        %v798 = vpop.f32.mrf.mxu0
        %v799 = vadd.f32 0.0, %v798
        %800 = vdwg.mxu0
        %801 = vmatprep.subr.mxu0 0.0
        %802 = vmatpush1.msra.mxu0 0.0
        %803 = vmatprep.subr.mxu0 0.0
        %804 = vmatpush1.msra.mxu0 0.0
        %805 = vmatprep.subr.mxu0 0.0
        %806 = vmatpush1.msra.mxu0 0.0
        %807 = vmatprep.subr.mxu0 0.0
        %808 = vmatpush1.msra.mxu0 0.0
        %809 = vmatprep.subr.mxu0 0.0
        %810 = vmatpush1.msra.mxu0 0.0
        %811 = vmatprep.subr.mxu0 0.0
        %812 = vmatpush1.msra.mxu0 0.0
        %813 = vmatprep.subr.mxu0 0.0
        %814 = vmatpush1.msra.mxu0 0.0
        %815 = vmatprep.subr.mxu0 0.0
        %816 = vmatpush1.msra.mxu0 0.0
        %817 = vmatprep.subr.mxu0 0.0
        %818 = vmatpush1.msra.mxu0 0.0
        %819 = vmatprep.subr.mxu0 0.0
        %820 = vmatpush1.msra.mxu0 0.0
        %821 = vmatprep.subr.mxu0 0.0
        %822 = vmatpush1.msra.mxu0 0.0
        %823 = vmatprep.subr.mxu0 %v728
        %824 = vmatpush1.msra.mxu0 %v726
        %825 = vmatprep.subr.mxu0 %v696
        %826 = vmatpush1.msra.mxu0 %v695
        %827 = vmatprep.subr.mxu0 %v692
        %828 = vmatpush1.msra.mxu0 %v691
        %829 = vmatprep.subr.mxu0 %v688
        %830 = vmatpush1.msra.mxu0 %v687
        %831 = vmatprep.subr.mxu0 %v684
        %832 = vmatpush1.msra.mxu0 %v683
        %833 = vmatprep.subr.mxu0 0.0
        %834 = vmatpush2.msra.mxu0 0.0
        %835 = vmatprep.subr.mxu0 0.0
        %836 = vmatpush2.msra.mxu0 0.0
        %837 = vmatprep.subr.mxu0 0.0
        %838 = vmatpush2.msra.mxu0 0.0
        %839 = vmatprep.subr.mxu0 0.0
        %840 = vmatpush2.msra.mxu0 0.0
        %841 = vmatprep.subr.mxu0 0.0
        %842 = vmatpush2.msra.mxu0 0.0
        %843 = vmatprep.subr.mxu0 0.0
        %844 = vmatpush2.msra.mxu0 0.0
        %845 = vmatprep.subr.mxu0 0.0
        %846 = vmatpush2.msra.mxu0 0.0
        %847 = vmatprep.subr.mxu0 0.0
        %848 = vmatpush2.msra.mxu0 0.0
        %849 = vmatprep.subr.mxu0 0.0
        %850 = vmatpush2.msra.mxu0 0.0
        %851 = vmatprep.subr.mxu0 0.0
        %852 = vmatpush2.msra.mxu0 0.0
        %853 = vmatprep.subr.mxu0 0.0
        %854 = vmatpush2.msra.mxu0 0.0
        %855 = vmatprep.subr.mxu0 0.0
        %856 = vmatpush2.msra.mxu0 0.0
        %857 = vmatprep.subr.mxu0 0.0
        %858 = vmatpush2.msra.mxu0 0.0
        %859 = vmatprep.subr.mxu0 0.0
        %860 = vmatpush2.msra.mxu0 0.0
        %861 = vmatprep.subr.mxu0 0.0
        %862 = vmatpush2.msra.mxu0 0.0
        %863 = vmatprep.subr.mxu0 0.0
        %864 = vmatpush2.msra.mxu0 0.0
        %865 = vmatprep.mubr.f32.mxu0 0.0
        %866 = vmatmul.mubr.f32.gmra.mxu0 %v719
        %v867 = vpop.f32.mrf.mxu0
        %v868 = vadd.f32 0.0, %v867
        %v869 = vpop.f32.mrf.mxu0
        %v870 = vadd.f32 0.0, %v869
        %871 = vdwg.mxu0
        %v872 = vtanh.pop %v358
        %v873 = vtanh.pop %v360
        %v874 = vtanh.pop %v429
        %v875 = vtanh.pop %v431
        %v880 = vrot.slane %v797, 4
        %v881 = vrot.slane %v799, 4
        %v882 = vrot.slane %v868, 4
        %v883 = vrot.slane %v870, 4
        %v888 = vadd.f32 %v358, %v880
        %v889 = vadd.f32 %v360, %v881
        %v890 = vadd.f32 %v429, %v882
        %v891 = vadd.f32 %v431, %v883
        %v892 = vxor.u32 %v888, 2147483648
        %v893 = vxor.u32 %v889, 2147483648
        %v894 = vxor.u32 %v890, 2147483648
        %v895 = vxor.u32 %v891, 2147483648
        %v896 = vmul.f32 %v892, 1.442695
        %v897 = vpow.pop %v896
        %v898 = vmul.f32 %v893, 1.442695
        %v899 = vpow.pop %v898
        %v900 = vmul.f32 %v894, 1.442695
        %v901 = vpow.pop %v900
        %v902 = vmul.f32 %v895, 1.442695
        %v903 = vpow.pop %v902
        %v904 = vadd.f32 %v897, 1.0
        %v905 = vadd.f32 %v899, 1.0
        %v906 = vadd.f32 %v901, 1.0
        %v907 = vadd.f32 %v903, 1.0
        %v908 = vrcp.pop %v904
        %v909 = vmul.f32 1.0, %v908
        %v910 = vrcp.pop %v905
        %v911 = vmul.f32 1.0, %v910
        %v912 = vrcp.pop %v906
        %v913 = vmul.f32 1.0, %v912
        %v914 = vrcp.pop %v907
        %v915 = vmul.f32 1.0, %v914
        %v920 = vrot.slane %v909, 4
        %v921 = vrot.slane %v911, 4
        %v922 = vrot.slane %v913, 4
        %v923 = vrot.slane %v915, 4
        %v928 = vmul.f32 %v872, %v920
        %v929 = vmul.f32 %v873, %v921
        %v930 = vmul.f32 %v874, %v922
        %v931 = vmul.f32 %v875, %v923
        %v936 = vcombine.low %v928, %v929
        %v937 = vcombine.low %v930, %v931
        %940 = vst [vmem:[%s214] sm:$0xff] %v936
        %941 = vst [vmem:[%s214 + $0x8] sm:$0xff] %v937
        %942 = vrot.lane.b32.xlu0 %v920, 34
        %v943 = vpop.permute.xlu0 %942
        %944 = vrot.lane.b32.xlu0 %v921, 34
        %v945 = vpop.permute.xlu0 %944
        %946 = vrot.lane.b32.xlu0 %v922, 34
        %v947 = vpop.permute.xlu0 %946
        %948 = vrot.lane.b32.xlu0 %v923, 34
        %v949 = vpop.permute.xlu0 %948
        %vm950 = vcmask 277504
        %v951 = vsel %vm950, %v943, %v945
        %v952 = vsel %vm950, %v945, %v947
        %v953 = vsel %vm950, %v947, %v949
        %vm959 = vcmask 1043728
        %960 = vst.msk [vmem:[#allocation2] sm:$0xf] %vm959, %v943
        %961 = vst [vmem:[#allocation2 + $0x8] sm:$0xf] %v951
        %962 = vst [vmem:[#allocation2 + $0x10] sm:$0xf] %v952
        %963 = vst [vmem:[#allocation2 + $0x18] sm:$0xf] %v953
        %vm964 = vcmask 273408
        %965 = vst.msk [vmem:[#allocation2 + $0x20] sm:$0xf] %vm964, %v949
        %966 = vrot.lane.b32.xlu0 %v909, 33
        %v967 = vpop.permute.xlu0 %966
        %968 = vrot.lane.b32.xlu0 %v911, 33
        %v969 = vpop.permute.xlu0 %968
        %970 = vrot.lane.b32.xlu0 %v913, 33
        %v971 = vpop.permute.xlu0 %970
        %972 = vrot.lane.b32.xlu0 %v915, 33
        %v973 = vpop.permute.xlu0 %972
        %vm974 = vcmask 269312
        %v975 = vsel %vm974, %v967, %v969
        %v976 = vsel %vm974, %v969, %v971
        %v977 = vsel %vm974, %v971, %v973
        %vm983 = vcmask 1047820
        %984 = vst.msk [vmem:[#allocation2] sm:$0xf0] %vm983, %v967
        %985 = vst [vmem:[#allocation2 + $0x8] sm:$0xf0] %v975
        %986 = vst [vmem:[#allocation2 + $0x10] sm:$0xf0] %v976
        %987 = vst [vmem:[#allocation2 + $0x18] sm:$0xf0] %v977
        %vm988 = vcmask 269316
        %989 = vst.msk [vmem:[#allocation2 + $0x20] sm:$0xf0] %vm988, %v973
        %990 = vrot.lane.b32.xlu0 %v920, 32
        %v991 = vpop.permute.xlu0 %990
        %992 = vrot.lane.b32.xlu0 %v921, 32
        %v993 = vpop.permute.xlu0 %992
        %994 = vrot.lane.b32.xlu0 %v922, 32
        %v995 = vpop.permute.xlu0 %994
        %996 = vrot.lane.b32.xlu0 %v923, 32
        %v997 = vpop.permute.xlu0 %996
        %vm998 = vcmask 261120
        %v999 = vsel %vm998, %v991, %v993
        %v1000 = vsel %vm998, %v993, %v995
        %v1001 = vsel %vm998, %v995, %v997
        %vm1007 = vcmask 1043712
        %1008 = vst.msk [vmem:[#allocation2 + $0x28] sm:$0xf] %vm1007, %v991
        %1009 = vst [vmem:[#allocation2 + $0x30] sm:$0xf] %v999
        %1010 = vst [vmem:[#allocation2 + $0x38] sm:$0xf] %v1000
        %1011 = vst [vmem:[#allocation2 + $0x40] sm:$0xf] %v1001
        %vm1012 = vcmask 257024
        %1013 = vst.msk [vmem:[#allocation2 + $0x48] sm:$0xf] %vm1012, %v997
        %1014 = vrot.lane.b32.xlu0 %v909, 18
        %v1015 = vpop.permute.xlu0 %1014
        %1016 = vrot.lane.b32.xlu0 %v911, 18
        %v1017 = vpop.permute.xlu0 %1016
        %1018 = vrot.lane.b32.xlu0 %v913, 18
        %v1019 = vpop.permute.xlu0 %1018
        %1020 = vrot.lane.b32.xlu0 %v915, 18
        %v1021 = vpop.permute.xlu0 %1020
        %vm1022 = vcmask 146432
        %v1023 = vsel %vm1022, %v1015, %v1017
        %v1024 = vsel %vm1022, %v1017, %v1019
        %v1025 = vsel %vm1022, %v1019, %v1021
        %vm1031 = vcmask 1047700
        %1032 = vst.msk [vmem:[#allocation2 + $0x28] sm:$0xf0] %vm1031, %v1015
        %1033 = vst [vmem:[#allocation2 + $0x30] sm:$0xf0] %v1023
        %1034 = vst [vmem:[#allocation2 + $0x38] sm:$0xf0] %v1024
        %1035 = vst [vmem:[#allocation2 + $0x40] sm:$0xf0] %v1025
        %vm1036 = vcmask 146436
        %1037 = vst.msk [vmem:[#allocation2 + $0x48] sm:$0xf0] %vm1036, %v1021
        %1038 = vrot.lane.b32.xlu0 %v920, 17
        %v1039 = vpop.permute.xlu0 %1038
        %1040 = vrot.lane.b32.xlu0 %v921, 17
        %v1041 = vpop.permute.xlu0 %1040
        %1042 = vrot.lane.b32.xlu0 %v922, 17
        %v1043 = vpop.permute.xlu0 %1042
        %1044 = vrot.lane.b32.xlu0 %v923, 17
        %v1045 = vpop.permute.xlu0 %1044
        %v1046 = vsel %vm538, %v1039, %v1041
        %v1047 = vsel %vm538, %v1041, %v1043
        %v1048 = vsel %vm538, %v1043, %v1045
        %vm1054 = vcmask 1043592
        %1055 = vst.msk [vmem:[#allocation2 + $0x50] sm:$0xf] %vm1054, %v1039
        %1056 = vst [vmem:[#allocation2 + $0x58] sm:$0xf] %v1046
        %1057 = vst [vmem:[#allocation2 + $0x60] sm:$0xf] %v1047
        %1058 = vst [vmem:[#allocation2 + $0x68] sm:$0xf] %v1048
        %vm1059 = vcmask 134144
        %1060 = vst.msk [vmem:[#allocation2 + $0x70] sm:$0xf] %vm1059, %v1045
        %1061 = vrot.lane.b32.xlu0 %v909, 16
        %v1062 = vpop.permute.xlu0 %1061
        %1063 = vrot.lane.b32.xlu0 %v911, 16
        %v1064 = vpop.permute.xlu0 %1063
        %1065 = vrot.lane.b32.xlu0 %v913, 16
        %v1066 = vpop.permute.xlu0 %1065
        %1067 = vrot.lane.b32.xlu0 %v915, 16
        %v1068 = vpop.permute.xlu0 %1067
        %vm1069 = vcmask 130048
        %v1070 = vsel %vm1069, %v1062, %v1064
        %v1071 = vsel %vm1069, %v1064, %v1066
        %v1072 = vsel %vm1069, %v1066, %v1068
        %vm1078 = vcmask 1047684
        %1079 = vst.msk [vmem:[#allocation2 + $0x50] sm:$0xf0] %vm1078, %v1062
        %1080 = vst [vmem:[#allocation2 + $0x58] sm:$0xf0] %v1070
        %1081 = vst [vmem:[#allocation2 + $0x60] sm:$0xf0] %v1071
        %1082 = vst [vmem:[#allocation2 + $0x68] sm:$0xf0] %v1072
        %vm1083 = vcmask 130052
        %1084 = vst.msk [vmem:[#allocation2 + $0x70] sm:$0xf0] %vm1083, %v1068
        %1085 = vrot.lane.b32.xlu0 %v920, 2
        %v1086 = vpop.permute.xlu0 %1085
        %1087 = vrot.lane.b32.xlu0 %v921, 2
        %v1088 = vpop.permute.xlu0 %1087
        %1089 = vrot.lane.b32.xlu0 %v922, 2
        %v1090 = vpop.permute.xlu0 %1089
        %1091 = vrot.lane.b32.xlu0 %v923, 2
        %v1092 = vpop.permute.xlu0 %1091
        %vm1093 = vcmask 15360
        %v1094 = vsel %vm1093, %v1086, %v1088
        %v1095 = vsel %vm1093, %v1088, %v1090
        %v1096 = vsel %vm1093, %v1090, %v1092
        %vm1102 = vcmask 1043472
        %1103 = vst.msk [vmem:[#allocation2 + $0x78] sm:$0xf] %vm1102, %v1086
        %1104 = vst [vmem:[#allocation2 + $0x80] sm:$0xf] %v1094
        %1105 = vst [vmem:[#allocation2 + $0x88] sm:$0xf] %v1095
        %1106 = vst [vmem:[#allocation2 + $0x90] sm:$0xf] %v1096
        %vm1107 = vcmask 11264
        %1108 = vst.msk [vmem:[#allocation2 + $0x98] sm:$0xf] %vm1107, %v1092
        %1109 = vrot.lane.b32.xlu0 %v909, 1
        %v1110 = vpop.permute.xlu0 %1109
        %1111 = vrot.lane.b32.xlu0 %v911, 1
        %v1112 = vpop.permute.xlu0 %1111
        %1113 = vrot.lane.b32.xlu0 %v913, 1
        %v1114 = vpop.permute.xlu0 %1113
        %1115 = vrot.lane.b32.xlu0 %v915, 1
        %v1116 = vpop.permute.xlu0 %1115
        %vm1117 = vcmask 7168
        %v1118 = vsel %vm1117, %v1110, %v1112
        %v1119 = vsel %vm1117, %v1112, %v1114
        %v1120 = vsel %vm1117, %v1114, %v1116
        %vm1126 = vcmask 1047564
        %1127 = vst.msk [vmem:[#allocation2 + $0x78] sm:$0xf0] %vm1126, %v1110
        %1128 = vst [vmem:[#allocation2 + $0x80] sm:$0xf0] %v1118
        %1129 = vst [vmem:[#allocation2 + $0x88] sm:$0xf0] %v1119
        %1130 = vst [vmem:[#allocation2 + $0x90] sm:$0xf0] %v1120
        %vm1131 = vcmask 7172
        %1132 = vst.msk [vmem:[#allocation2 + $0x98] sm:$0xf0] %vm1131, %v1116
        %1133 = vst [vmem:[#allocation2 + $0xa0] sm:$0xf] %v920
        %1134 = vst [vmem:[#allocation2 + $0xa8] sm:$0xf] %v921
        %1135 = vst [vmem:[#allocation2 + $0xb0] sm:$0xf] %v922
        %1136 = vst [vmem:[#allocation2 + $0xb8] sm:$0xf] %v923
        %p1137 = scmp.eq.s32.totalorder %s21, 3
        // Predicated region
        $region41: #{tpu_custom_call.1} parent=35 // pred_check
          %p1138 = pneg %p1137
        $region42: #{tpu_custom_call.1} parent=35 // pred_check_branch
          %1140 = sbr.rel (%p1138) target = $region44
        $region43: #{tpu_custom_call.1} parent=35 // pred_region
          %v1141 = vcombine.high %v909, %v911
          %v1142 = vcombine.high %v913, %v915
          %1145 = vst [vmem:[#allocation5] sm:$0xff] %v1141
          %1146 = vst [vmem:[#allocation5 + $0x8] sm:$0xff] %v1142
        $region44: #{tpu_custom_call.1} parent=35 // pred_fallthru
          _
        %s1147 = sand.u32 %s118, 1
        %s1148 = scalar_lea.sflag [#allocation4], %s1147
        %s1149 = sand.u32 %s118, 1
        %s1150 = smul.addr %s1149, 16
        %s1151 = scalar_lea.vmem [#allocation3], %s1150
        // Predicated region
        $region45: #{tpu_custom_call.1} parent=35 // pred_check
          %p1152 = pneg %p128
        $region46: #{tpu_custom_call.1} parent=35 // pred_check_branch
          %1154 = sbr.rel (%p1152) target = $region48
        $region47: #{tpu_custom_call.1} parent=35 // pred_region
          %s1156 = ssub.s32 256, 256
          %1157 = vsyncadd %s1148, %s1156
          %s1158 = smul.addr %s21, 4
          %s1159 = smul.addr %s1158, 64
          %s1160 = scalar_lea.hbm %s4, %s1159
          %s1162 = sshll.u32 %s1151, 4
          %s1163 = int_to_ptr.vmem [resolvable:$true] %s1162
          %1165 = dma.vmem_to_hbm [thread:$0]  %s1163, 256, %s1160, %s1148
        $region48: #{tpu_custom_call.1} parent=35 // pred_fallthru
          _
        // Predicated region
        $region49: #{tpu_custom_call.1} parent=35 // pred_check
          %p1166 = pneg %p149
        $region50: #{tpu_custom_call.1} parent=35 // pred_check_branch
          %1168 = sbr.rel (%p1166) target = $region52
        $region51: #{tpu_custom_call.1} parent=35 // pred_region
          %s1170 = ssub.s32 256, 256
          %1171 = vsyncadd [#allocation6], %s1170
          %s1173 = sshll.u32 [#allocation5], 4
          %s1174 = int_to_ptr.vmem [resolvable:$true] %s1173
          %1176 = dma.vmem_to_hbm [thread:$0]  %s1174, 256, %s5, [#allocation6]
        $region52: #{tpu_custom_call.1} parent=35 // pred_fallthru
          _
        // Predicated region
        $region53: #{tpu_custom_call.1} parent=35 // pred_check
          %p1177 = pneg %p149
        $region54: #{tpu_custom_call.1} parent=35 // pred_check_branch
          %1179 = sbr.rel (%p1177) target = $region56
        $region55: #{tpu_custom_call.1} parent=35 // pred_region
          %1180 = dma.done [#allocation6], 256
        $region56: #{tpu_custom_call.1} parent=35 // pred_fallthru
          _
      $region36: #{tpu_custom_call.1} parent=5 // pred_fallthru
        _
      %p1181 = scmp.le.s32.totalorder 2, %s16
      // Predicated region
      $region57: #{tpu_custom_call.1} parent=5 // pred_check
        %p1182 = pneg %p1181
      $region58: #{tpu_custom_call.1} parent=5 // pred_check_branch
        %1184 = sbr.rel (%p1182) target = $region60
      $region59: #{tpu_custom_call.1} parent=5 // pred_region
        %s1185 = ssub.s32 %s16, 2
        // Predicated region
        $region61: #{tpu_custom_call.1} parent=59 // pred_check
          %p1186 = pneg %p134
        $region62: #{tpu_custom_call.1} parent=59 // pred_check_branch
          %1188 = sbr.rel (%p1186) target = $region64
        $region63: #{tpu_custom_call.1} parent=59 // pred_region
          %s1189 = sand.u32 %s119, 1
          %s1190 = scalar_lea.sflag [#allocation4], %s1189
          %s1191 = sand.u32 %s119, 1
          %s1192 = smul.addr %s1191, 16
          %s1193 = scalar_lea.vmem [#allocation3], %s1192
          %1194 = dma.done %s1190, 256
        $region64: #{tpu_custom_call.1} parent=59 // pred_fallthru
          _
      $region60: #{tpu_custom_call.1} parent=5 // pred_fallthru
        _
    $region6: #{tpu_custom_call.1} parent=1 // loop_footer
      %s20 = sadd.s32 1, %s16
    $region7: #{tpu_custom_call.1} parent=1 // loop_footer_branch
      %15 = sbr.rel target = $region3
    $region8: #{tpu_custom_call.1} parent=1 // loop_exit
      _
    %1195 = vsyncpa [#allocation4], 1
    %s1196 = scalar_lea.sflag [#allocation4], 1
    %1197 = vsyncpa %s1196, 1
    %1198 = vsyncpa [#allocation6], 1

</llo_original>
